<compile_context>
chip_gen: v7x
topology: tpu7x:2x2x1
jax: 0.10.0
libtpu: 0.0.40
codegen_flags: <defaults>
</compile_context>

<pallas_src>
import jax
import jax.numpy as jnp
from jax.experimental import pallas as pl
from jax.experimental.pallas import tpu as pltpu


LAYERNORM_EPS = 1e-12


def _bert_embeddings_kernel(x_ref, w_ref, posb_ref, gb_ref, o_ref):
    """layernorm(x @ W + (pos + bias)) * gamma + beta for one (TS, :) row tile.

    Per-grid-step shapes:
      x_ref:    (TS, C)   input rows (one batch element, one sequence tile)
      w_ref:    (C, H)    word-embedding weight (resident across the grid)
      posb_ref: (TS, H)   position embeddings for this sequence tile + folded word bias
      gb_ref:   (2, H)    row 0 = gamma, row 1 = beta
      o_ref:    (TS, H)
    """
    # MXU matmul at native input dtype, f32 accumulation.
    h = jnp.dot(x_ref[...], w_ref[...], preferred_element_type=jnp.float32)
    h = h + posb_ref[...].astype(jnp.float32)

    # TF-style LayerNorm over the last axis (eps inside the sqrt), f32 math.
    u = jnp.mean(h, axis=-1, keepdims=True)
    d = h - u
    s = jnp.mean(d * d, axis=-1, keepdims=True)
    normed = d * jax.lax.rsqrt(s + LAYERNORM_EPS)          # rsqrt -> EUP slot

    gamma = gb_ref[0:1, :].astype(jnp.float32)
    beta = gb_ref[1:2, :].astype(jnp.float32)
    # TODO(synk): dropout is identity in eval mode; training-mode RNG dropout not implemented.
    o_ref[...] = (gamma * normed + beta).astype(o_ref.dtype)


def _choose_row_tile(S, C, H, itemsize, vmem_budget_bytes=24 * 1024 * 1024):
    """Largest sequence row tile (multiple of 8, <= 1024) that fits a conservative
    double-buffered VMEM budget (keeps headroom below the 32 MiB scoped default /
    v7x's 64 MiB physical VMEM)."""
    per_row = 2 * (C + 2 * H) * max(int(itemsize), 4)      # x + pos + out tiles, 2x buffered
    max_rows = max(8, vmem_budget_bytes // max(per_row, 1))
    ts = int(min(1024, max_rows))
    if S <= ts:
        return max(8, ((S + 7) // 8) * 8)                  # single tile over (padded) S
    return max(8, (ts // 8) * 8)


def bert_embeddings_forward(input_ids, w_word, b_word, pos_table, gamma, beta,
                            out_dtype=None):
    """input_ids: (B, S, C) float features; returns (B, S, H)."""
    B, S, C = input_ids.shape
    H = w_word.shape[1]
    if S > pos_table.shape[0]:
        raise ValueError(
            f"sequence length {S} exceeds max_position_embeddings {pos_table.shape[0]}")
    out_dtype = input_ids.dtype if out_dtype is None else out_dtype

    TS = _choose_row_tile(S, C, H, jnp.dtype(input_ids.dtype).itemsize)
    S_pad = ((S + TS - 1) // TS) * TS

    # Position embeddings for arange(S) with the word bias folded in.  This stays a tiny
    # (S_pad, H) slab that the kernel indexes per sequence tile -- never (B*S, H).
    posb = pos_table[:S].astype(jnp.float32) + b_word.astype(jnp.float32)[None, :]
    if S_pad != S:
        posb = jnp.pad(posb, ((0, S_pad - S), (0, 0)))
        input_ids = jnp.pad(input_ids, ((0, 0), (0, S_pad - S), (0, 0)))

    gb = jnp.stack([gamma, beta], axis=0)                  # (2, H)

    grid = (B, S_pad // TS)

    cost = pl.CostEstimate(
        flops=2 * B * S_pad * C * H,
        transcendentals=B * S_pad,
        bytes_accessed=(input_ids.size * input_ids.dtype.itemsize
                        + w_word.size * w_word.dtype.itemsize
                        + posb.size * posb.dtype.itemsize
                        + gb.size * gb.dtype.itemsize
                        + B * S_pad * H * jnp.dtype(out_dtype).itemsize),
    )

    out = pl.pallas_call(
        _bert_embeddings_kernel,
        out_shape=jax.ShapeDtypeStruct((B, S_pad, H), out_dtype),
        grid_spec=pltpu.PrefetchScalarGridSpec(
            num_scalar_prefetch=0,
            grid=grid,
            in_specs=[
                pl.BlockSpec((None, TS, C), lambda b, s: (b, s, 0)),  # x rows (batch squeezed)
                pl.BlockSpec((C, H), lambda b, s: (0, 0)),            # word weight (resident)
                pl.BlockSpec((TS, H), lambda b, s: (s, 0)),           # pos + bias per seq tile
                pl.BlockSpec((2, H), lambda b, s: (0, 0)),            # packed gamma/beta
            ],
            out_specs=pl.BlockSpec((None, TS, H), lambda b, s: (b, s, 0)),
        ),
        compiler_params=pltpu.CompilerParams(
            dimension_semantics=("parallel", "parallel"),
            vmem_limit_bytes=64 * 1024 * 1024,
        ),
        cost_estimate=cost,
    )(input_ids, w_word, posb, gb)

    # TODO(synk): for configs with H < 128 the (TS, H) output block lowers to masked
    # (non-lane-dense) stores; a lane-dense (TS//k, k*H) repack would need an in-kernel
    # cross-lane reshape and is skipped for lowering robustness (real BERT H >= 128 is fine).
    return out[:, :S, :]


def _reference_forward(input_ids, w_word, b_word, pos_table, gamma, beta):
    """Pure-JAX reference for correctness checking."""
    B, S, _ = input_ids.shape
    words = jnp.einsum("bsc,ch->bsh", input_ids, w_word) + b_word
    pos = pos_table[jnp.arange(S)][None, :, :]
    h = words + pos
    u = jnp.mean(h, axis=-1, keepdims=True)
    s = jnp.mean((h - u) ** 2, axis=-1, keepdims=True)
    normed = (h - u) / jnp.sqrt(s + LAYERNORM_EPS)
    return gamma * normed + beta


if __name__ == "__main__":
    # Small config consistent with the module:
    #   csi_size=16, hidden_size=32, max_position_embeddings=16, batch=2, seq=8
    B, S, CSI, HIDDEN, MAX_POS = 2, 8, 16, 32, 16

    key = jax.random.PRNGKey(0)
    k_x, k_w, k_b, k_pos = jax.random.split(key, 4)

    # nn.Linear(csi_size, hidden): weight (hidden, csi); stored transposed (csi, hidden).
    w_word = jax.random.normal(k_w, (CSI, HIDDEN), jnp.float32) * 0.02
    b_word = jax.random.normal(k_b, (HIDDEN,), jnp.float32) * 0.02
    # nn.Embedding(max_position_embeddings, hidden)
    pos_table = jax.random.normal(k_pos, (MAX_POS, HIDDEN), jnp.float32) * 0.02
    # BERTLayerNorm: gamma=ones, beta=zeros
    gamma = jnp.ones((HIDDEN,), jnp.float32)
    beta = jnp.zeros((HIDDEN,), jnp.float32)

    # Input: (B, S, csi_size) float features ("input_ids" is a CSI feature tensor here).
    input_ids = jax.random.normal(k_x, (B, S, CSI), jnp.float32)

    out = bert_embeddings_forward(input_ids, w_word, b_word, pos_table, gamma, beta)
    out = jax.block_until_ready(out)
    ref = _reference_forward(input_ids, w_word, b_word, pos_table, gamma, beta)
    assert out.shape == (B, S, HIDDEN)
    assert jnp.allclose(out, ref, atol=1e-5, rtol=1e-5), "mismatch vs reference"

    # Ragged sequence length (not a multiple of the tile) exercises the padding path.
    S_ragged = 5
    x_ragged = jax.random.normal(jax.random.PRNGKey(1), (B, S_ragged, CSI), jnp.float32)
    out_r = bert_embeddings_forward(x_ragged, w_word, b_word, pos_table, gamma, beta)
    out_r = jax.block_until_ready(out_r)
    ref_r = _reference_forward(x_ragged, w_word, b_word, pos_table, gamma, beta)
    assert out_r.shape == (B, S_ragged, HIDDEN)
    assert jnp.allclose(out_r, ref_r, atol=1e-5, rtol=1e-5), "ragged mismatch vs reference"

    print("KERNEL_OK")
</pallas_src>

<mosaic_0001>
module attributes {stable_mosaic.version = 11 : i64} {
  func.func @_bert_embeddings_kernel(%arg0: i32, %arg1: i32, %arg2: memref<1x8x16xf32, #tpu.memory_space<vmem>>, %arg3: memref<16x32xf32, #tpu.memory_space<vmem>>, %arg4: memref<8x32xf32, #tpu.memory_space<vmem>>, %arg5: memref<2x32xf32, #tpu.memory_space<vmem>>, %arg6: memref<1x8x32xf32, #tpu.memory_space<vmem>>) attributes {dimension_semantics = [#tpu.dimension_semantics<parallel>, #tpu.dimension_semantics<parallel>], iteration_bounds = array<i64: 2, 1>, scalar_prefetch = 0 : i64, scratch_operands = 0 : i64, tpu.core_type = #tpu.core_type<tc>, window_params = [{transform_indices = @transform_0, window_bounds = array<i64: 1, 8, 16>}, {pipeline_mode = #tpu.pipeline_mode<synchronous>, transform_indices = @transform_1, window_bounds = array<i64: 16, 32>}, {transform_indices = @transform_2, window_bounds = array<i64: 8, 32>}, {pipeline_mode = #tpu.pipeline_mode<synchronous>, transform_indices = @transform_3, window_bounds = array<i64: 2, 32>}, {transform_indices = @transform_4, window_bounds = array<i64: 1, 8, 32>}]} {
    %c0 = arith.constant 0 : index
    %c0_0 = arith.constant 0 : index
    %c0_1 = arith.constant 0 : index
    %0 = vector.load %arg2[%c0, %c0_0, %c0_1] : memref<1x8x16xf32, #tpu.memory_space<vmem>>, vector<1x8x16xf32>
    %1 = vector.shape_cast %0 : vector<1x8x16xf32> to vector<8x16xf32>
    %c0_2 = arith.constant 0 : index
    %c0_3 = arith.constant 0 : index
    %2 = vector.load %arg3[%c0_2, %c0_3] : memref<16x32xf32, #tpu.memory_space<vmem>>, vector<16x32xf32>
    %cst = arith.constant dense<0.000000e+00> : vector<8x32xf32>
    %3 = tpu.matmul %1, %2, %cst {dimension_numbers = #tpu.dot_dimension_numbers<[1], [0], [0], [1], [0, 0, 1, 1], [], []>} : vector<8x16xf32>, vector<16x32xf32>, vector<8x32xf32> -> vector<8x32xf32>
    %c0_4 = arith.constant 0 : index
    %c0_5 = arith.constant 0 : index
    %4 = vector.load %arg4[%c0_4, %c0_5] : memref<8x32xf32, #tpu.memory_space<vmem>>, vector<8x32xf32>
    %5 = arith.addf %3, %4 : vector<8x32xf32>
    %cst_6 = arith.constant dense<0.000000e+00> : vector<8xf32>
    %6 = vector.multi_reduction <add>, %5, %cst_6 [1] : vector<8x32xf32> to vector<8xf32>
    %7 = vector.shape_cast %6 : vector<8xf32> to vector<8x1xf32>
    %cst_7 = arith.constant 3.200000e+01 : f32
    %8 = vector.broadcast %cst_7 : f32 to vector<8x1xf32>
    %9 = arith.divf %7, %8 : vector<8x1xf32>
    %10 = vector.broadcast %9 : vector<8x1xf32> to vector<8x32xf32>
    %11 = arith.subf %5, %10 : vector<8x32xf32>
    %12 = arith.mulf %11, %11 : vector<8x32xf32>
    %cst_8 = arith.constant dense<0.000000e+00> : vector<8xf32>
    %13 = vector.multi_reduction <add>, %12, %cst_8 [1] : vector<8x32xf32> to vector<8xf32>
    %14 = vector.shape_cast %13 : vector<8xf32> to vector<8x1xf32>
    %cst_9 = arith.constant 3.200000e+01 : f32
    %15 = vector.broadcast %cst_9 : f32 to vector<8x1xf32>
    %16 = arith.divf %14, %15 : vector<8x1xf32>
    %cst_10 = arith.constant 9.99999996E-13 : f32
    %17 = vector.broadcast %cst_10 : f32 to vector<8x1xf32>
    %18 = arith.addf %16, %17 : vector<8x1xf32>
    %19 = math.rsqrt %18 : vector<8x1xf32>
    %20 = vector.broadcast %19 : vector<8x1xf32> to vector<8x32xf32>
    %21 = arith.mulf %11, %20 : vector<8x32xf32>
    %c0_11 = arith.constant 0 : index
    %c0_12 = arith.constant 0 : index
    %22 = vector.load %arg5[%c0_11, %c0_12] : memref<2x32xf32, #tpu.memory_space<vmem>>, vector<1x32xf32>
    %c1 = arith.constant 1 : index
    %c0_13 = arith.constant 0 : index
    %23 = vector.load %arg5[%c1, %c0_13] : memref<2x32xf32, #tpu.memory_space<vmem>>, vector<1x32xf32>
    %24 = vector.broadcast %22 : vector<1x32xf32> to vector<8x32xf32>
    %25 = arith.mulf %24, %21 : vector<8x32xf32>
    %26 = vector.broadcast %23 : vector<1x32xf32> to vector<8x32xf32>
    %27 = arith.addf %25, %26 : vector<8x32xf32>
    %c0_14 = arith.constant 0 : index
    %c0_15 = arith.constant 0 : index
    %c0_16 = arith.constant 0 : index
    %28 = vector.load %arg6[%c0_14, %c0_15, %c0_16] : memref<1x8x32xf32, #tpu.memory_space<vmem>>, vector<1x8x32xf32>
    %29 = vector.shape_cast %28 : vector<1x8x32xf32> to vector<8x32xf32>
    %30 = vector.shape_cast %27 : vector<8x32xf32> to vector<1x8x32xf32>
    tpu.vector_store %arg6[%c0_14, %c0_15, %c0_16], %30 {strides = array<i32>} : memref<1x8x32xf32, #tpu.memory_space<vmem>>, vector<1x8x32xf32>,
    return
  }
  func.func @transform_0(%arg0: i32, %arg1: i32) -> (i32, i32, i32) {
    %c0_i32 = arith.constant 0 : i32
    %c0_i32_0 = arith.constant 0 : i32
    return %arg0, %arg1, %c0_i32 : i32, i32, i32
  }
  func.func @transform_1(%arg0: i32, %arg1: i32) -> (i32, i32) {
    %c0_i32 = arith.constant 0 : i32
    %c0_i32_0 = arith.constant 0 : i32
    %c0_i32_1 = arith.constant 0 : i32
    return %c0_i32, %c0_i32_0 : i32, i32
  }
  func.func @transform_2(%arg0: i32, %arg1: i32) -> (i32, i32) {
    %c0_i32 = arith.constant 0 : i32
    %c0_i32_0 = arith.constant 0 : i32
    return %arg1, %c0_i32 : i32, i32
  }
  func.func @transform_3(%arg0: i32, %arg1: i32) -> (i32, i32) {
    %c0_i32 = arith.constant 0 : i32
    %c0_i32_0 = arith.constant 0 : i32
    %c0_i32_1 = arith.constant 0 : i32
    return %c0_i32, %c0_i32_0 : i32, i32
  }
  func.func @transform_4(%arg0: i32, %arg1: i32) -> (i32, i32, i32) {
    %c0_i32 = arith.constant 0 : i32
    %c0_i32_0 = arith.constant 0 : i32
    return %arg0, %arg1, %c0_i32 : i32, i32, i32
  }
}

</mosaic_0001>

<llo_original>
// kernel: tpu_custom_call.1
$region0: #{tpu_custom_call.1}
  #allocation0 [shape = 'u32[]', space=smem, size = 0x4, offset = 0x4, fixed_abs, tag = 'smem constant byte address 0x4 - core index']
  #allocation1 [shape = 'u32[144,128]{1,0:T(1,128)}', space=vmem, size = 0x12000, scoped, tag = 'internal scratch']
  %s0 = inlined_call_operand.hbm [shape: f32[2,8,16], index: 0, kind: input, shape index: {}]
  %s1 = inlined_call_operand.hbm [shape: f32[16,32], index: 1, kind: input, shape index: {}]
  %s2 = inlined_call_operand.hbm [shape: f32[8,32], index: 2, kind: input, shape index: {}]
  %s3 = inlined_call_operand.hbm [shape: f32[2,32], index: 3, kind: input, shape index: {}]
  %s4 = inlined_call_operand.hbm [shape: f32[2,8,32], index: 4, kind: output, shape index: {}]
  %s5 = sld [smem:[#allocation0]]
  $region65: #{tpu_custom_call.1} parent=0
    _
  %s7 = ssub.s32 1, %s5
  %s8 = scalar_select 0, %s7, %s5
  $region1: #{tpu_custom_call.1} parent=0
    #allocation2 [shape = 'u8[8192]{0}', space=vmem, size = 0x2000, scoped, tag = 'input window, operand 0']
    #allocation3 [shape = 's32[2]{0}', space=sflag, size = 0x8, scoped, tag = 'scoped memory for tpu_custom_call.1']
    #allocation4 [shape = 's32[2]{0}', space=sflag, size = 0x8, scoped, tag = 'scoped memory for tpu_custom_call.1']
    #allocation5 [shape = 'u8[8192]{0}', space=vmem, size = 0x2000, scoped, tag = 'input window, operand 1, single buffered']
    #allocation6 [shape = 's32[1]{0}', space=sflag, size = 0x4, scoped, tag = 'scoped memory for tpu_custom_call.1']
    #allocation7 [shape = 'u8[4096]{0}', space=vmem, size = 0x1000, scoped, tag = 'input window, operand 2, single buffered']
    #allocation8 [shape = 'u8[1024]{0}', space=vmem, size = 0x400, scoped, tag = 'input window, operand 3, single buffered']
    #allocation9 [shape = 's32[1]{0}', space=sflag, size = 0x4, scoped, tag = 'scoped memory for tpu_custom_call.1']
    #allocation10 [shape = 'u8[8192]{0}', space=vmem, size = 0x2000, scoped, tag = 'output window, operand 0']
    %9 = vsyncpa [#allocation3], 0
    %s10 = scalar_lea.sflag [#allocation3], 1
    %11 = vsyncpa %s10, 0
    %12 = vsyncpa [#allocation6], 0
    %13 = vsyncpa [#allocation9], 0
    %14 = vsyncpa [#allocation4], 0
    %s15 = scalar_lea.sflag [#allocation4], 1
    %16 = vsyncpa %s15, 0
    loop: start=0, step=1, limit=4
    $region2: #{tpu_custom_call.1} parent=1 // loop_pre_header
      _
    $region3: #{tpu_custom_call.1} parent=1 // loop_header
      %s18 = sphi 0, %s22
      %p19 = scmp.ge.s32.totalorder %s18, 4
      %s25 = sphi 0, %s37
      %s26 = sphi 0, %s33
      %s27 = sphi 0, %s25
      %s28 = sphi 0, %s26
      %s29 = sphi 0, %s27
      %s30 = sphi 0, %s28
      %s42 = sphi 0, %s44
      %s45 = sphi 0, %s42
      %s46 = sphi 0, %s45
      %s62 = sphi 0, %s46
      %s66 = sphi 0, %s66
      %s68 = sphi 0, %s66
      %s69 = sphi 0, %s68
      %s83 = sphi 0, %s69
      %s89 = sphi 0, %s91
      %s92 = sphi 0, %s89
      %s93 = sphi 0, %s92
      %s109 = sphi 0, %s93
      %s113 = sphi 0, %s113
      %s115 = sphi 0, %s113
      %s116 = sphi 0, %s115
      %s130 = sphi 0, %s116
      %s138 = sphi 0, %s140
      %s141 = sphi 0, %s138
      %s142 = sphi 0, %s141
      %s158 = sphi 0, %s142
    $region4: #{tpu_custom_call.1} parent=1 // loop_header_branch
      %21 = sbr.rel (%p19) target = $region8
    $region5: #{tpu_custom_call.1} parent=1 // loop_body
      %s23 = ssub.s32 %s18, 1
      %s24 = ssub.s32 %s18, 2
      %s31 = sadd.s32 1, %s26
      %p32 = scmp.ge.s32.totalorder %s31, 1
      %s33 = scalar_select %p32, 0, %s31
      %s34 = sadd.s32 1, %s25
      %s35 = scalar_select %p32, %s34, %s25
      %p36 = scmp.ge.s32.totalorder %s35, 2
      %s37 = scalar_select %p36, 0, %s35
      %s38 = ssub.s32 %s25, %s37
      %s39 = ssub.s32 %s26, %s33
      %s40 = sor.u32 %s38, %s39
      %p41 = scmp.eq.s32.totalorder %s40, 0
      %s43 = sadd.s32 %s42, 1
      %s44 = scalar_select %p41, %s42, %s43
      %p47 = pneg %p41
      %p48 = scmp.eq.s32.totalorder %s18, 1
      %p49 = por %p47, %p48
      %p50 = scmp.ne.s32.totalorder %s42, %s45
      %p51 = scmp.eq.s32.totalorder %s18, 0
      %p52 = por %p50, %p51
      %p53 = scmp.ne.s32.totalorder %s42, %s45
      %p54 = scmp.eq.s32.totalorder %s23, 1
      %p55 = por %p53, %p54
      %p56 = scmp.ne.s32.totalorder %s45, %s46
      %p57 = scmp.eq.s32.totalorder %s23, 0
      %p58 = por %p56, %p57
      %p59 = scmp.ne.s32.totalorder %s45, %s46
      %p60 = scmp.eq.s32.totalorder %s24, 1
      %p61 = por %p59, %p60
      %p63 = scmp.ne.s32.totalorder %s46, %s62
      %p64 = scmp.eq.s32.totalorder %s24, 0
      %p65 = por %p63, %p64
      %s67 = sadd.s32 %s66, 1
      %p70 = scmp.eq.s32.totalorder %s18, 1
      %p71 = scmp.ne.s32.totalorder %s66, %s68
      %p72 = scmp.eq.s32.totalorder %s18, 0
      %p73 = por %p71, %p72
      %p74 = scmp.ne.s32.totalorder %s66, %s68
      %p75 = scmp.eq.s32.totalorder %s23, 1
      %p76 = por %p74, %p75
      %p77 = scmp.ne.s32.totalorder %s68, %s69
      %p78 = scmp.eq.s32.totalorder %s23, 0
      %p79 = por %p77, %p78
      %p80 = scmp.ne.s32.totalorder %s68, %s69
      %p81 = scmp.eq.s32.totalorder %s24, 1
      %p82 = por %p80, %p81
      %p84 = scmp.ne.s32.totalorder %s69, %s83
      %p85 = scmp.eq.s32.totalorder %s24, 0
      %p86 = por %p84, %p85
      %s87 = ssub.s32 %s26, %s33
      %p88 = scmp.eq.s32.totalorder %s87, 0
      %s90 = sadd.s32 %s89, 1
      %s91 = scalar_select %p88, %s89, %s90
      %p94 = pneg %p88
      %p95 = scmp.eq.s32.totalorder %s18, 1
      %p96 = por %p94, %p95
      %p97 = scmp.ne.s32.totalorder %s89, %s92
      %p98 = scmp.eq.s32.totalorder %s18, 0
      %p99 = por %p97, %p98
      %p100 = scmp.ne.s32.totalorder %s89, %s92
      %p101 = scmp.eq.s32.totalorder %s23, 1
      %p102 = por %p100, %p101
      %p103 = scmp.ne.s32.totalorder %s92, %s93
      %p104 = scmp.eq.s32.totalorder %s23, 0
      %p105 = por %p103, %p104
      %p106 = scmp.ne.s32.totalorder %s92, %s93
      %p107 = scmp.eq.s32.totalorder %s24, 1
      %p108 = por %p106, %p107
      %p110 = scmp.ne.s32.totalorder %s93, %s109
      %p111 = scmp.eq.s32.totalorder %s24, 0
      %p112 = por %p110, %p111
      %s114 = sadd.s32 %s113, 1
      %p117 = scmp.eq.s32.totalorder %s18, 1
      %p118 = scmp.ne.s32.totalorder %s113, %s115
      %p119 = scmp.eq.s32.totalorder %s18, 0
      %p120 = por %p118, %p119
      %p121 = scmp.ne.s32.totalorder %s113, %s115
      %p122 = scmp.eq.s32.totalorder %s23, 1
      %p123 = por %p121, %p122
      %p124 = scmp.ne.s32.totalorder %s115, %s116
      %p125 = scmp.eq.s32.totalorder %s23, 0
      %p126 = por %p124, %p125
      %p127 = scmp.ne.s32.totalorder %s115, %s116
      %p128 = scmp.eq.s32.totalorder %s24, 1
      %p129 = por %p127, %p128
      %p131 = scmp.ne.s32.totalorder %s116, %s130
      %p132 = scmp.eq.s32.totalorder %s24, 0
      %p133 = por %p131, %p132
      %s134 = ssub.s32 %s25, %s37
      %s135 = ssub.s32 %s26, %s33
      %s136 = sor.u32 %s134, %s135
      %p137 = scmp.eq.s32.totalorder %s136, 0
      %s139 = sadd.s32 %s138, 1
      %s140 = scalar_select %p137, %s138, %s139
      %p143 = pneg %p137
      %p144 = scmp.eq.s32.totalorder %s18, 1
      %p145 = por %p143, %p144
      %p146 = scmp.ne.s32.totalorder %s138, %s141
      %p147 = scmp.eq.s32.totalorder %s18, 0
      %p148 = por %p146, %p147
      %p149 = scmp.ne.s32.totalorder %s138, %s141
      %p150 = scmp.eq.s32.totalorder %s23, 1
      %p151 = por %p149, %p150
      %p152 = scmp.ne.s32.totalorder %s141, %s142
      %p153 = scmp.eq.s32.totalorder %s23, 0
      %p154 = por %p152, %p153
      %p155 = scmp.ne.s32.totalorder %s141, %s142
      %p156 = scmp.eq.s32.totalorder %s24, 1
      %p157 = por %p155, %p156
      %p159 = scmp.ne.s32.totalorder %s142, %s158
      %p160 = scmp.eq.s32.totalorder %s24, 0
      %p161 = por %p159, %p160
      %p162 = scmp.le.s32.totalorder 1, %s18
      %p163 = scmp.lt.s32.totalorder %s18, 3
      %p164 = pnand %p162, %p163
      %p165 = pneg %p164
      // Predicated region
      $region9: #{tpu_custom_call.1} parent=5 // pred_check
        _
      $region10: #{tpu_custom_call.1} parent=5 // pred_check_branch
        %167 = sbr.rel (%p164) target = $region12
      $region11: #{tpu_custom_call.1} parent=5 // pred_region
        %s168 = ssub.s32 %s18, 1
        // Predicated region
        $region13: #{tpu_custom_call.1} parent=11 // pred_check
          %p169 = pneg %p79
        $region14: #{tpu_custom_call.1} parent=11 // pred_check_branch
          %171 = sbr.rel (%p169) target = $region16
        $region15: #{tpu_custom_call.1} parent=11 // pred_region
          %s173 = ssub.s32 256, 256
          %174 = vsyncadd [#allocation6], %s173
          %s175 = sshll.u32 [#allocation5], 4
          %s176 = int_to_ptr.vmem [resolvable:$true] %s175
          %181 = dma.hbm_to_vmem [thread:$0]  %s1, 256, %s176, [#allocation6], 128, 128, 8
        $region16: #{tpu_custom_call.1} parent=11 // pred_fallthru
          _
        // Predicated region
        $region17: #{tpu_custom_call.1} parent=11 // pred_check
          %p182 = pneg %p105
        $region18: #{tpu_custom_call.1} parent=11 // pred_check_branch
          %184 = sbr.rel (%p182) target = $region20
        $region19: #{tpu_custom_call.1} parent=11 // pred_region
          %s186 = ssub.s32 128, 128
          %187 = vsyncadd [#allocation6], %s186
          %s188 = smul.addr %s28, 128
          %s189 = scalar_lea.hbm %s2, %s188
          %s191 = sshll.u32 [#allocation7], 4
          %s192 = int_to_ptr.vmem [resolvable:$true] %s191
          %194 = dma.hbm_to_vmem [thread:$0]  %s189, 128, %s192, [#allocation6]
        $region20: #{tpu_custom_call.1} parent=11 // pred_fallthru
          _
        // Predicated region
        $region21: #{tpu_custom_call.1} parent=11 // pred_check
          %p195 = pneg %p126
        $region22: #{tpu_custom_call.1} parent=11 // pred_check_branch
          %197 = sbr.rel (%p195) target = $region24
        $region23: #{tpu_custom_call.1} parent=11 // pred_region
          %s199 = ssub.s32 32, 32
          %200 = vsyncadd [#allocation9], %s199
          %s202 = sshll.u32 [#allocation8], 4
          %s203 = int_to_ptr.vmem [resolvable:$true] %s202
          %205 = dma.hbm_to_vmem [thread:$0]  %s3, 32, %s203, [#allocation9]
        $region24: #{tpu_custom_call.1} parent=11 // pred_fallthru
          _
      $region12: #{tpu_custom_call.1} parent=5 // pred_fallthru
        _
      %p206 = scmp.lt.s32.totalorder %s18, 2
      // Predicated region
      $region25: #{tpu_custom_call.1} parent=5 // pred_check
        %p207 = pneg %p206
      $region26: #{tpu_custom_call.1} parent=5 // pred_check_branch
        %209 = sbr.rel (%p207) target = $region28
      $region27: #{tpu_custom_call.1} parent=5 // pred_region
        // Predicated region
        $region29: #{tpu_custom_call.1} parent=27 // pred_check
          %p210 = pneg %p52
        $region30: #{tpu_custom_call.1} parent=27 // pred_check_branch
          %212 = sbr.rel (%p210) target = $region32
        $region31: #{tpu_custom_call.1} parent=27 // pred_region
          %s213 = sand.u32 %s42, 1
          %s214 = scalar_lea.sflag [#allocation3], %s213
          %s215 = sand.u32 %s42, 1
          %s216 = smul.addr %s215, 8
          %s217 = scalar_lea.vmem [#allocation2], %s216
          %s219 = ssub.s32 128, 128
          %220 = vsyncadd %s214, %s219
          %s221 = sadd.s32 %s26, %s25
          %s222 = smul.addr %s221, 128
          %s223 = scalar_lea.hbm %s0, %s222
          %s225 = sshll.u32 %s217, 4
          %s226 = int_to_ptr.vmem [resolvable:$true] %s225
          %228 = dma.hbm_to_vmem [thread:$0]  %s223, 128, %s226, %s214
        $region32: #{tpu_custom_call.1} parent=27 // pred_fallthru
          _
      $region28: #{tpu_custom_call.1} parent=5 // pred_fallthru
        _
      %p229 = scmp.le.s32.totalorder 1, %s18
      %p230 = scmp.lt.s32.totalorder %s18, 3
      %p231 = pnand %p229, %p230
      %p232 = pneg %p231
      // Predicated region
      $region33: #{tpu_custom_call.1} parent=5 // pred_check
        _
      $region34: #{tpu_custom_call.1} parent=5 // pred_check_branch
        %234 = sbr.rel (%p231) target = $region36
      $region35: #{tpu_custom_call.1} parent=5 // pred_region
        %s235 = ssub.s32 %s18, 1
        %s236 = sand.u32 %s45, 1
        %s237 = scalar_lea.sflag [#allocation3], %s236
        %s238 = sand.u32 %s45, 1
        %s239 = smul.addr %s238, 8
        %s240 = scalar_lea.vmem [#allocation2], %s239
        // Predicated region
        $region37: #{tpu_custom_call.1} parent=35 // pred_check
          %p241 = pneg %p58
        $region38: #{tpu_custom_call.1} parent=35 // pred_check_branch
          %243 = sbr.rel (%p241) target = $region40
        $region39: #{tpu_custom_call.1} parent=35 // pred_region
          %244 = dma.done %s237, 128
        $region40: #{tpu_custom_call.1} parent=35 // pred_fallthru
          _
        // Predicated region
        $region41: #{tpu_custom_call.1} parent=35 // pred_check
          %p245 = pneg %p79
        $region42: #{tpu_custom_call.1} parent=35 // pred_check_branch
          %247 = sbr.rel (%p245) target = $region44
        $region43: #{tpu_custom_call.1} parent=35 // pred_region
          %248 = dma.done [#allocation6], 256
        $region44: #{tpu_custom_call.1} parent=35 // pred_fallthru
          _
        // Predicated region
        $region45: #{tpu_custom_call.1} parent=35 // pred_check
          %p249 = pneg %p105
        $region46: #{tpu_custom_call.1} parent=35 // pred_check_branch
          %251 = sbr.rel (%p249) target = $region48
        $region47: #{tpu_custom_call.1} parent=35 // pred_region
          %252 = dma.done [#allocation6], 128
        $region48: #{tpu_custom_call.1} parent=35 // pred_fallthru
          _
        // Predicated region
        $region49: #{tpu_custom_call.1} parent=35 // pred_check
          %p253 = pneg %p126
        $region50: #{tpu_custom_call.1} parent=35 // pred_check_branch
          %255 = sbr.rel (%p253) target = $region52
        $region51: #{tpu_custom_call.1} parent=35 // pred_region
          %256 = dma.done [#allocation9], 32
        $region52: #{tpu_custom_call.1} parent=35 // pred_fallthru
          _
        %s257 = sand.u32 %s45, 1
        %s258 = scalar_lea.sflag [#allocation3], %s257
        %s259 = sand.u32 %s45, 1
        %s260 = smul.addr %s259, 8
        %s261 = scalar_lea.vmem [#allocation2], %s260
        %p262 = pneg %p58
        %p263 = pneg %p55
        %p264 = pneg %p79
        %p265 = pneg %p76
        %p266 = pneg %p105
        %p267 = pneg %p102
        %p268 = pneg %p126
        %p269 = pneg %p123
        %p270 = pneg %p154
        %p271 = pneg %p151
        %s272 = sand.u32 %s141, 1
        %s273 = scalar_lea.sflag [#allocation4], %s272
        %s274 = sand.u32 %s141, 1
        %s275 = smul.addr %s274, 8
        %s276 = scalar_lea.vmem [#allocation10], %s275
        %v277 = vld [vmem:[%s240] sm:$0xff]
        %v278 = vld [vmem:[#allocation5] sm:$0xff]
        %v279 = vld [vmem:[#allocation5 + $0x8] sm:$0xff]
        %v280 = vld [vmem:[#allocation7] sm:$0xff]
        %vm281 = vcmask 130048
        %v283 = vsel %vm281, %v277, 0
        %285 = vmatprep.subr.mxu0 0.0
        %286 = vmatpush1.msra.mxu0 %v278
        %287 = vmatprep.subr.mxu0 0.0
        %288 = vmatpush1.msra.mxu0 %v279
        %289 = vmatprep.subr.mxu0 0.0
        %290 = vmatpush1.msra.mxu0 0.0
        %291 = vmatprep.subr.mxu0 0.0
        %292 = vmatpush1.msra.mxu0 0.0
        %293 = vmatprep.subr.mxu0 0.0
        %294 = vmatpush1.msra.mxu0 0.0
        %295 = vmatprep.subr.mxu0 0.0
        %296 = vmatpush1.msra.mxu0 0.0
        %297 = vmatprep.subr.mxu0 0.0
        %298 = vmatpush1.msra.mxu0 0.0
        %299 = vmatprep.subr.mxu0 0.0
        %300 = vmatpush1.msra.mxu0 0.0
        %301 = vmatprep.subr.mxu0 0.0
        %302 = vmatpush1.msra.mxu0 0.0
        %303 = vmatprep.subr.mxu0 0.0
        %304 = vmatpush1.msra.mxu0 0.0
        %305 = vmatprep.subr.mxu0 0.0
        %306 = vmatpush1.msra.mxu0 0.0
        %307 = vmatprep.subr.mxu0 0.0
        %308 = vmatpush1.msra.mxu0 0.0
        %309 = vmatprep.subr.mxu0 0.0
        %310 = vmatpush1.msra.mxu0 0.0
        %311 = vmatprep.subr.mxu0 0.0
        %312 = vmatpush1.msra.mxu0 0.0
        %313 = vmatprep.subr.mxu0 0.0
        %314 = vmatpush1.msra.mxu0 0.0
        %315 = vmatprep.subr.mxu0 0.0
        %316 = vmatpush1.msra.mxu0 0.0
        %317 = vmatprep.subr.mxu0 0.0
        %318 = vmatpush1.msra.mxu0 0.0
        %319 = vmatprep.subr.mxu0 0.0
        %320 = vmatpush1.msra.mxu0 0.0
        %321 = vmatprep.subr.mxu0 0.0
        %322 = vmatpush1.msra.mxu0 0.0
        %323 = vmatprep.subr.mxu0 0.0
        %324 = vmatpush1.msra.mxu0 0.0
        %325 = vmatprep.subr.mxu0 0.0
        %326 = vmatpush1.msra.mxu0 0.0
        %327 = vmatprep.subr.mxu0 0.0
        %328 = vmatpush1.msra.mxu0 0.0
        %329 = vmatprep.subr.mxu0 0.0
        %330 = vmatpush1.msra.mxu0 0.0
        %331 = vmatprep.subr.mxu0 0.0
        %332 = vmatpush1.msra.mxu0 0.0
        %333 = vmatprep.subr.mxu0 0.0
        %334 = vmatpush1.msra.mxu0 0.0
        %335 = vmatprep.subr.mxu0 0.0
        %336 = vmatpush1.msra.mxu0 0.0
        %337 = vmatprep.subr.mxu0 0.0
        %338 = vmatpush1.msra.mxu0 0.0
        %339 = vmatprep.subr.mxu0 0.0
        %340 = vmatpush1.msra.mxu0 0.0
        %341 = vmatprep.subr.mxu0 0.0
        %342 = vmatpush1.msra.mxu0 0.0
        %343 = vmatprep.subr.mxu0 0.0
        %344 = vmatpush1.msra.mxu0 0.0
        %345 = vmatprep.subr.mxu0 0.0
        %346 = vmatpush1.msra.mxu0 0.0
        %347 = vmatprep.subr.mxu0 0.0
        %348 = vmatpush1.msra.mxu0 0.0
        %349 = vmatprep.mubr.f32.mxu0 0.0
        %350 = vmatmul.mubr.f32.gmra.mrb[0].mxu0 %v283
        %v351 = vpop.f32.mrb[0].mxu0
        %v352 = vadd.f32 %v280, %v351
        %v353 = vpop.f32.mrb[0].mxu0
        %354 = vdwg.mxu0
        %vm355 = vcmask 261120
        %v356 = vsel %vm355, %v352, 0.0
        %357 = vadd.xlane.f32.xlu0 %v356
        %v358 = vpop.xlane.xlu0 %357
        %v359 = vrcp.pop 32.0
        %v360 = vmul.f32 %v358, %v359
        %v361 = vsub.f32 %v352, %v360
        %v362 = vmul.f32 %v361, %v361
        %v363 = vsel %vm355, %v362, 0.0
        %364 = vadd.xlane.f32.xlu0 %v363
        %v365 = vpop.xlane.xlu0 %364
        %v366 = vmul.f32 %v365, %v359
        %v367 = vadd.f32 %v366, 1e-12
        %v368 = vrsqrt.pop %v367
        %v369 = vmul.f32 %v361, %v368
        %v370 = vld [vmem:[#allocation8] sm:$0x1]
        %v371 = vld [vmem:[#allocation8 + $0x1] sm:$0x1]
        %v372 = vlaneseq
        %v373 = vshrl.u32 %v372, 7
        %v374 = vsub.s32 0, %v373
        %v375 = vrot.slane %v370, %v374
        %v376 = vmul.f32 %v375, %v369
        %v377 = vlaneseq
        %v378 = vshrl.u32 %v377, 7
        %v379 = vsub.s32 0, %v378
        %v380 = vrot.slane %v371, %v379
        %v381 = vadd.f32 %v376, %v380
        %382 = vst.msk [vmem:[%s276] sm:$0xff] %vm355, %v381
        %s383 = sand.u32 %s141, 1
        %s384 = scalar_lea.sflag [#allocation4], %s383
        %s385 = sand.u32 %s141, 1
        %s386 = smul.addr %s385, 8
        %s387 = scalar_lea.vmem [#allocation10], %s386
        // Predicated region
        $region53: #{tpu_custom_call.1} parent=35 // pred_check
          %p388 = pneg %p151
        $region54: #{tpu_custom_call.1} parent=35 // pred_check_branch
          %390 = sbr.rel (%p388) target = $region56
        $region55: #{tpu_custom_call.1} parent=35 // pred_region
          %s392 = ssub.s32 128, 128
          %393 = vsyncadd %s384, %s392
          %s394 = sadd.s32 %s28, %s27
          %s395 = smul.addr %s394, 128
          %s396 = scalar_lea.hbm %s4, %s395
          %s398 = sshll.u32 %s387, 4
          %s399 = int_to_ptr.vmem [resolvable:$true] %s398
          %401 = dma.vmem_to_hbm [thread:$0]  %s399, 128, %s396, %s384
        $region56: #{tpu_custom_call.1} parent=35 // pred_fallthru
          _
      $region36: #{tpu_custom_call.1} parent=5 // pred_fallthru
        _
      %p402 = scmp.le.s32.totalorder 2, %s18
      // Predicated region
      $region57: #{tpu_custom_call.1} parent=5 // pred_check
        %p403 = pneg %p402
      $region58: #{tpu_custom_call.1} parent=5 // pred_check_branch
        %405 = sbr.rel (%p403) target = $region60
      $region59: #{tpu_custom_call.1} parent=5 // pred_region
        %s406 = ssub.s32 %s18, 2
        // Predicated region
        $region61: #{tpu_custom_call.1} parent=59 // pred_check
          %p407 = pneg %p157
        $region62: #{tpu_custom_call.1} parent=59 // pred_check_branch
          %409 = sbr.rel (%p407) target = $region64
        $region63: #{tpu_custom_call.1} parent=59 // pred_region
          %s410 = sand.u32 %s142, 1
          %s411 = scalar_lea.sflag [#allocation4], %s410
          %s412 = sand.u32 %s142, 1
          %s413 = smul.addr %s412, 8
          %s414 = scalar_lea.vmem [#allocation10], %s413
          %415 = dma.done %s411, 128
        $region64: #{tpu_custom_call.1} parent=59 // pred_fallthru
          _
      $region60: #{tpu_custom_call.1} parent=5 // pred_fallthru
        _
    $region6: #{tpu_custom_call.1} parent=1 // loop_footer
      %s22 = sadd.s32 1, %s18
    $region7: #{tpu_custom_call.1} parent=1 // loop_footer_branch
      %17 = sbr.rel target = $region3
    $region8: #{tpu_custom_call.1} parent=1 // loop_exit
      _
    %416 = vsyncpa [#allocation3], 1
    %s417 = scalar_lea.sflag [#allocation3], 1
    %418 = vsyncpa %s417, 1
    %419 = vsyncpa [#allocation6], 1
    %420 = vsyncpa [#allocation9], 1
    %421 = vsyncpa [#allocation4], 1
    %s422 = scalar_lea.sflag [#allocation4], 1
    %423 = vsyncpa %s422, 1

</llo_original>
